<compile_context>
chip_gen: v5e
topology: v5e:2x2
jax: 0.10.0
libtpu: 0.0.40
codegen_flags: <defaults>
</compile_context>

<pallas_src>
from functools import partial

import jax
import jax.numpy as jnp
import numpy as np
from jax.experimental import pallas as pl
from jax.experimental.pallas import tpu as pltpu


def _patch_embed_kernel(x_ref, w_ref, b_ref, o_ref):
    # x_ref: (TM, Kp) bf16 patches, w_ref: (Kp, Ep) bf16 projection,
    # b_ref: (1, Ep) f32 bias, o_ref: (TM, Ep) output tile.
    acc = jnp.dot(x_ref[...], w_ref[...], preferred_element_type=jnp.float32)
    o_ref[...] = (acc + b_ref[...]).astype(o_ref.dtype)


def _round_up(v, m):
    return ((v + m - 1) // m) * m


@partial(jax.jit, static_argnames=("patch_size",))
def patch_embed_forward(x, weight, bias, patch_size):
    """x: (B, C, H, W); weight: (E, C, P, P) [PyTorch Conv2d layout]; bias: (E,)."""
    B, C, H, W = x.shape
    E = weight.shape[0]
    P = patch_size
    GH, GW = H // P, W // P
    N = GH * GW
    K = C * P * P
    M = B * N

    compute_dtype = jnp.bfloat16      # MXU-native on v5e/v6e/v7x
    out_dtype = x.dtype

    # Lane-dense / sublane-aligned padded extents.
    Kp = _round_up(K, 128)
    Ep = _round_up(E, 128)

    # Row tile: large enough to amortize the ~0.35us per-grid-step overhead and
    # keep the MXU fed, small enough that 2x double-buffered (TM,Kp)+(TM,Ep)
    # tiles plus the resident (Kp,Ep) weight fit comfortably in VMEM on v7x
    # (64 MiB physical, 32 MiB default scoped limit).
    TM_MAX = 512
    TM = min(TM_MAX, _round_up(M, 16))
    Mp = _round_up(M, TM)

    # Patchify in bf16: (B,C,GH,P,GW,P) -> (B,GH,GW,C,P,P) -> (M, K).
    # (Kept in the XLA wrapper; fusing the im2col into the kernel would need an
    # in-VMEM 5-D transpose per block — left as a wrapper op, done in bf16 to
    # halve its HBM traffic.)
    patches = x.astype(compute_dtype).reshape(B, C, GH, P, GW, P)
    patches = patches.transpose(0, 2, 4, 1, 3, 5).reshape(M, K)
    patches = jnp.pad(patches, ((0, Mp - M), (0, Kp - K)))

    # Conv2d weight flattened with the same (c, kh, kw) order: (E, K) -> (Kp, Ep).
    w2d = weight.reshape(E, K).astype(compute_dtype)
    w2d = jnp.pad(w2d, ((0, Ep - E), (0, Kp - K))).T
    b2d = jnp.pad(bias.astype(jnp.float32).reshape(1, E), ((0, 0), (0, Ep - E)))

    out = pl.pallas_call(
        _patch_embed_kernel,
        out_shape=jax.ShapeDtypeStruct((Mp, Ep), out_dtype),
        grid=(Mp // TM,),
        in_specs=[
            pl.BlockSpec((TM, Kp), lambda i: (i, 0)),    # patches: tiles over M
            pl.BlockSpec((Kp, Ep), lambda i: (0, 0)),    # weight: resident
            pl.BlockSpec((1, Ep), lambda i: (0, 0)),     # bias: resident
        ],
        out_specs=pl.BlockSpec((TM, Ep), lambda i: (i, 0)),
        compiler_params=pltpu.CompilerParams(
            dimension_semantics=("parallel",),           # dual-TC sharding on v7x
        ),
    )(patches, w2d, b2d)

    # Strip padding, reshape to (B, num_patches, embed_dim) — matches
    # `proj(x).flatten(2).transpose(1, 2)`.
    return out[:M, :E].reshape(B, N, E)


if __name__ == "__main__":
    # Small, module-consistent shapes: img=16, patch=4, in_channels=4, embed=32
    B, C, IMG, PATCH, EMBED = 2, 4, 16, 4, 32

    key = jax.random.PRNGKey(0)
    kx, kw, kb = jax.random.split(key, 3)

    x = jax.random.normal(kx, (B, C, IMG, IMG), dtype=jnp.float32)
    # Deterministic synthetic Conv2d parameters (shapes from nn.Conv2d(C, E, P, P))
    weight = jax.random.normal(kw, (EMBED, C, PATCH, PATCH), dtype=jnp.float32) * 0.02
    bias = jax.random.normal(kb, (EMBED,), dtype=jnp.float32) * 0.02

    out = patch_embed_forward(x, weight, bias, PATCH)
    out = jax.block_until_ready(out)

    # Reference: strided conv in matching precision (bf16 operands, f32 accum),
    # then flatten(2).transpose(1, 2).
    ref_conv = jax.lax.conv_general_dilated(
        x.astype(jnp.bfloat16), weight.astype(jnp.bfloat16),
        window_strides=(PATCH, PATCH), padding="VALID",
        dimension_numbers=("NCHW", "OIHW", "NCHW"),
        preferred_element_type=jnp.float32,
    ) + bias.reshape(1, EMBED, 1, 1)
    GH = IMG // PATCH
    ref = ref_conv.reshape(B, EMBED, GH * GH).transpose(0, 2, 1)

    np.testing.assert_allclose(
        np.asarray(out, dtype=np.float32),
        np.asarray(ref, dtype=np.float32),
        rtol=1e-2, atol=1e-2,
    )
    assert out.shape == (B, GH * GH, EMBED)
    print("KERNEL_OK")
</pallas_src>

<mosaic_0001>
module attributes {stable_mosaic.version = 11 : i64} {
  func.func @_patch_embed_kernel(%arg0: i32, %arg1: memref<32x128xbf16, #tpu.memory_space<vmem>>, %arg2: memref<128x128xbf16, #tpu.memory_space<vmem>>, %arg3: memref<1x128xf32, #tpu.memory_space<vmem>>, %arg4: memref<32x128xf32, #tpu.memory_space<vmem>>) attributes {dimension_semantics = [#tpu.dimension_semantics<parallel>], iteration_bounds = array<i64: 1>, scalar_prefetch = 0 : i64, scratch_operands = 0 : i64, tpu.core_type = #tpu.core_type<tc>, window_params = [{transform_indices = @transform_0, window_bounds = array<i64: 32, 128>}, {pipeline_mode = #tpu.pipeline_mode<synchronous>, transform_indices = @transform_1, window_bounds = array<i64: 128, 128>}, {pipeline_mode = #tpu.pipeline_mode<synchronous>, transform_indices = @transform_2, window_bounds = array<i64: 1, 128>}, {transform_indices = @transform_3, window_bounds = array<i64: 32, 128>}]} {
    %c0 = arith.constant 0 : index
    %c0_0 = arith.constant 0 : index
    %0 = vector.load %arg1[%c0, %c0_0] : memref<32x128xbf16, #tpu.memory_space<vmem>>, vector<32x128xbf16>
    %c0_1 = arith.constant 0 : index
    %c0_2 = arith.constant 0 : index
    %1 = vector.load %arg2[%c0_1, %c0_2] : memref<128x128xbf16, #tpu.memory_space<vmem>>, vector<128x128xbf16>
    %cst = arith.constant dense<0.000000e+00> : vector<32x128xf32>
    %2 = tpu.matmul %0, %1, %cst {dimension_numbers = #tpu.dot_dimension_numbers<[1], [0], [0], [1], [0, 0, 1, 1], [], []>} : vector<32x128xbf16>, vector<128x128xbf16>, vector<32x128xf32> -> vector<32x128xf32>
    %c0_3 = arith.constant 0 : index
    %c0_4 = arith.constant 0 : index
    %3 = vector.load %arg3[%c0_3, %c0_4] : memref<1x128xf32, #tpu.memory_space<vmem>>, vector<1x128xf32>
    %4 = vector.broadcast %3 : vector<1x128xf32> to vector<32x128xf32>
    %5 = arith.addf %2, %4 : vector<32x128xf32>
    %c0_5 = arith.constant 0 : index
    %c0_6 = arith.constant 0 : index
    %6 = vector.load %arg4[%c0_5, %c0_6] : memref<32x128xf32, #tpu.memory_space<vmem>>, vector<32x128xf32>
    tpu.vector_store %arg4[%c0_5, %c0_6], %5 {strides = array<i32>} : memref<32x128xf32, #tpu.memory_space<vmem>>, vector<32x128xf32>,
    return
  }
  func.func @transform_0(%arg0: i32) -> (i32, i32) {
    %c0_i32 = arith.constant 0 : i32
    %c0_i32_0 = arith.constant 0 : i32
    return %arg0, %c0_i32 : i32, i32
  }
  func.func @transform_1(%arg0: i32) -> (i32, i32) {
    %c0_i32 = arith.constant 0 : i32
    %c0_i32_0 = arith.constant 0 : i32
    %c0_i32_1 = arith.constant 0 : i32
    return %c0_i32, %c0_i32_0 : i32, i32
  }
  func.func @transform_2(%arg0: i32) -> (i32, i32) {
    %c0_i32 = arith.constant 0 : i32
    %c0_i32_0 = arith.constant 0 : i32
    %c0_i32_1 = arith.constant 0 : i32
    return %c0_i32, %c0_i32_0 : i32, i32
  }
  func.func @transform_3(%arg0: i32) -> (i32, i32) {
    %c0_i32 = arith.constant 0 : i32
    %c0_i32_0 = arith.constant 0 : i32
    return %arg0, %c0_i32 : i32, i32
  }
}

</mosaic_0001>

<llo_original>
// kernel: patch_embed_forward.1
$region0: #{patch_embed_forward.1}
  #allocation0 [shape = 'u32[]', space=smem, size = 0x4, offset = 0x4, fixed_abs, tag = 'smem constant byte address 0x4 - core index']
  #allocation1 [shape = 'u32[72,128]{1,0:T(1,128)}', space=vmem, size = 0x9000, scoped, tag = 'internal scratch']
  %s0 = inlined_call_operand.vmem [shape: bf16[32,128], index: 0, kind: input, shape index: {}]
  %s1 = inlined_call_operand.vmem [shape: bf16[128,128], index: 1, kind: input, shape index: {}]
  %s2 = inlined_call_operand.vmem [shape: f32[1,128], index: 2, kind: input, shape index: {}]
  %s3 = inlined_call_operand.hbm [shape: f32[32,128], index: 3, kind: output, shape index: {}]
  %s4 = sld [smem:[#allocation0]]
  $region22: #{patch_embed_forward.1} parent=0
    _
  %s6 = ssub.s32 1, %s4
  %s7 = scalar_select 0, %s6, %s4
  $region1: #{patch_embed_forward.1} parent=0
    #allocation2 [shape = 'u8[16384]{0}', space=vmem, size = 0x4000, scoped, tag = 'output window, operand 0, single buffered']
    #allocation3 [shape = 's32[1]{0}', space=sflag, size = 0x4, scoped, tag = 'scoped memory for patch_embed_forward.1']
    %8 = vsyncpa [#allocation3], 0
    // Predicated region
    $region2: #{patch_embed_forward.1} parent=1 // pred_check
      _
    $region3: #{patch_embed_forward.1} parent=1 // pred_check_branch
      %10 = sbr.rel (0) target = $region5
    $region4: #{patch_embed_forward.1} parent=1 // pred_region
      _
    $region5: #{patch_embed_forward.1} parent=1 // pred_fallthru
      _
    // Predicated region
    $region6: #{patch_embed_forward.1} parent=1 // pred_check
      _
    $region7: #{patch_embed_forward.1} parent=1 // pred_check_branch
      %12 = sbr.rel (0) target = $region9
    $region8: #{patch_embed_forward.1} parent=1 // pred_region
      _
    $region9: #{patch_embed_forward.1} parent=1 // pred_fallthru
      _
    // Predicated region
    $region10: #{patch_embed_forward.1} parent=1 // pred_check
      _
    $region11: #{patch_embed_forward.1} parent=1 // pred_check_branch
      %14 = sbr.rel (0) target = $region13
    $region12: #{patch_embed_forward.1} parent=1 // pred_region
      _
    $region13: #{patch_embed_forward.1} parent=1 // pred_fallthru
      _
    %v15 = vld [vmem:[%s0] sm:$0xf]
    %v16 = vld [vmem:[%s0 + $0x4] sm:$0xf]
    %v17 = vld [vmem:[%s0 + $0x8] sm:$0xf]
    %v18 = vld [vmem:[%s0 + $0xc] sm:$0xf]
    %v19 = vld [vmem:[%s1] sm:$0xf]
    %v20 = vld [vmem:[%s1 + $0x4] sm:$0xf]
    %v21 = vld [vmem:[%s1 + $0x8] sm:$0xf]
    %v22 = vld [vmem:[%s1 + $0xc] sm:$0xf]
    %v23 = vld [vmem:[%s1 + $0x10] sm:$0xf]
    %v24 = vld [vmem:[%s1 + $0x14] sm:$0xf]
    %v25 = vld [vmem:[%s1 + $0x18] sm:$0xf]
    %v26 = vld [vmem:[%s1 + $0x1c] sm:$0xf]
    %v27 = vld [vmem:[%s1 + $0x20] sm:$0xf]
    %v28 = vld [vmem:[%s1 + $0x24] sm:$0xf]
    %v29 = vld [vmem:[%s1 + $0x28] sm:$0xf]
    %v30 = vld [vmem:[%s1 + $0x2c] sm:$0xf]
    %v31 = vld [vmem:[%s1 + $0x30] sm:$0xf]
    %v32 = vld [vmem:[%s1 + $0x34] sm:$0xf]
    %v33 = vld [vmem:[%s1 + $0x38] sm:$0xf]
    %v34 = vld [vmem:[%s1 + $0x3c] sm:$0xf]
    %v35 = vld [vmem:[%s2] sm:$0x1]
    %v37 = vperm.slane %v35, 0
    %v43 = vunpack.c.l.b16 %v15
    %v44 = vunpack.c.l.b16 %v16
    %v45 = vunpack.c.l.b16 %v17
    %v46 = vunpack.c.l.b16 %v18
    %v47 = vpack.c.b16 %v44, %v43
    %v48 = vpack.c.b16 %v46, %v45
    %v67 = vunpack.c.l.b16 %v19
    %v68 = vunpack.c.l.b16 %v20
    %v69 = vunpack.c.l.b16 %v21
    %v70 = vunpack.c.l.b16 %v22
    %v71 = vunpack.c.l.b16 %v23
    %v72 = vunpack.c.l.b16 %v24
    %v73 = vunpack.c.l.b16 %v25
    %v74 = vunpack.c.l.b16 %v26
    %v75 = vunpack.c.l.b16 %v27
    %v76 = vunpack.c.l.b16 %v28
    %v77 = vunpack.c.l.b16 %v29
    %v78 = vunpack.c.l.b16 %v30
    %v79 = vunpack.c.l.b16 %v31
    %v80 = vunpack.c.l.b16 %v32
    %v81 = vunpack.c.l.b16 %v33
    %v82 = vunpack.c.l.b16 %v34
    %v83 = vpack.c.b16 %v68, %v67
    %v84 = vpack.c.b16 %v70, %v69
    %v85 = vpack.c.b16 %v72, %v71
    %v86 = vpack.c.b16 %v74, %v73
    %v87 = vpack.c.b16 %v76, %v75
    %v88 = vpack.c.b16 %v78, %v77
    %v89 = vpack.c.b16 %v80, %v79
    %v90 = vpack.c.b16 %v82, %v81
    %99 = vmatpush.bf16.msra.mxu0 %v90
    %100 = vmatpush.bf16.msra.mxu0 %v89
    %101 = vmatpush.bf16.msra.mxu0 %v88
    %102 = vmatpush.bf16.msra.mxu0 %v87
    %103 = vmatpush.bf16.msra.mxu0 %v86
    %104 = vmatpush.bf16.msra.mxu0 %v85
    %105 = vmatpush.bf16.msra.mxu0 %v84
    %106 = vmatpush.bf16.msra.mxu0 %v83
    %107 = vmatmul.bf16.gmra.mxu0 %v47
    %v108 = vpop.f32.mrf.mxu0
    %v109 = vadd.f32 %v37, %v108
    %v110 = vpop.f32.mrf.mxu0
    %v111 = vadd.f32 %v37, %v110
    %112 = vmatmul.bf16.gmra.mxu0 %v48
    %v113 = vpop.f32.mrf.mxu0
    %v114 = vadd.f32 %v37, %v113
    %v115 = vpop.f32.mrf.mxu0
    %v116 = vadd.f32 %v37, %v115
    %117 = vdwg.mxu0
    %118 = vst [vmem:[#allocation2] sm:$0xff] %v109
    %119 = vst [vmem:[#allocation2 + $0x8] sm:$0xff] %v111
    %120 = vst [vmem:[#allocation2 + $0x10] sm:$0xff] %v114
    %121 = vst [vmem:[#allocation2 + $0x18] sm:$0xff] %v116
    // Predicated region
    $region14: #{patch_embed_forward.1} parent=1 // pred_check
      _
    $region15: #{patch_embed_forward.1} parent=1 // pred_check_branch
      %123 = sbr.rel (0) target = $region17
    $region16: #{patch_embed_forward.1} parent=1 // pred_region
      %125 = vsyncadd [#allocation3], 0
      %s126 = sshll.u32 [#allocation2], 4
      %s127 = int_to_ptr.vmem [resolvable:$true] %s126
      %s128 = sshll.u32 %s3, 4
      %s129 = int_to_ptr.hbm [resolvable:$true] %s128
      %134 = dma.vmem_to_hbm [thread:$0]  %s127, 512, %s129, [#allocation3], 128, 128, 8
    $region17: #{patch_embed_forward.1} parent=1 // pred_fallthru
      _
    // Predicated region
    $region18: #{patch_embed_forward.1} parent=1 // pred_check
      _
    $region19: #{patch_embed_forward.1} parent=1 // pred_check_branch
      %136 = sbr.rel (0) target = $region21
    $region20: #{patch_embed_forward.1} parent=1 // pred_region
      %138 = dma.done [#allocation3], 512
    $region21: #{patch_embed_forward.1} parent=1 // pred_fallthru
      _
    %139 = vsyncpa [#allocation3], 1

</llo_original>
